<compile_context>
chip_gen: v7x
topology: tpu7x:2x2x1
jax: 0.10.0
libtpu: 0.0.40
codegen_flags: <defaults>
</compile_context>

<pallas_src>
import functools

import jax
import jax.numpy as jnp
from jax import lax
from jax.experimental import pallas as pl
from jax.experimental.pallas import tpu as pltpu

_LANE = 128


def _sublanes_for(dtype):
    """Native sublane count for the dtype's VMEM tile: (8,128) f32, (16,128) bf16, ..."""
    itemsize = jnp.dtype(dtype).itemsize
    return {4: 8, 2: 16, 1: 32}.get(itemsize, 8)


@functools.lru_cache(maxsize=None)
def _chip_tiling_defaults():
    """Returns (max_block_vregs, two_tensorcores) for the local TPU generation."""
    try:
        kind = jax.devices()[0].device_kind.lower()
    except Exception:
        kind = ""
    two_tc = ("v7" in kind) or ("v4" in kind) or ("v5p" in kind)

    # v5e: slow HBM makes per-step overhead small already; stay inside the
    # 16 MiB default scoped-VMEM limit with 2 MiB/input blocks.
    if "v5e" in kind or ("v5" in kind and "lite" in kind):
        return 512, two_tc

    try:
        vmem_cap = pltpu.get_tpu_info().vmem_capacity_bytes
    except Exception:
        return 512, two_tc

    # One vreg-row of any supported dtype is 4096 bytes; target
    # 2 inputs x 2 pipeline buffers x (bs*4096 B) <= min(32 MiB, vmem/2).
    # -> bs = 2048 (8 MiB/input) on v6e (128 MiB) and v7x (64 MiB).
    budget = min(32 << 20, vmem_cap // 2)
    bs = max(64, min(2048, budget // (4 * 4096)))
    return int(bs), two_tc


def content_loss_forward(x, target, *, max_block_vregs=None):
    """Returns (output, loss): output == x (identity), loss == mean((x - target)**2)."""
    assert x.shape == target.shape, "input and target must have the same shape"
    n_total = x.size
    if n_total == 0:
        return x, jnp.float32(0.0)

    # Promote both streams to a single working dtype (normally a no-op).
    work_dtype = jnp.promote_types(x.dtype, target.dtype)
    xw = x if x.dtype == work_dtype else x.astype(work_dtype)
    tw = target if target.dtype == work_dtype else target.astype(work_dtype)

    sub = _sublanes_for(work_dtype)
    vreg_elems = sub * _LANE
    itemsize = jnp.dtype(work_dtype).itemsize

    bs_default, two_tc = _chip_tiling_defaults()
    if max_block_vregs is None:
        max_block_vregs = bs_default
    ncores_hw = 2 if two_tc else 1

    n_aligned = (n_total // vreg_elems) * vreg_elems
    rem = n_total - n_aligned

    sq_sum = jnp.zeros((), jnp.float32)

    if n_aligned > 0:
        if rem == 0:
            # Free (bitcast) reshape of the contiguous arrays — zero extra HBM traffic.
            x3 = xw.reshape(-1, sub, _LANE)
            t3 = tw.reshape(-1, sub, _LANE)
        else:
            # TODO(synk): for element counts that are not a multiple of sub*128 the
            # prefix slice may materialize a copy; only the < sub*128-element tail
            # is computed outside the kernel (no jnp.pad of the full arrays).
            x3 = xw.reshape(-1)[:n_aligned].reshape(-1, sub, _LANE)
            t3 = tw.reshape(-1)[:n_aligned].reshape(-1, sub, _LANE)

        # ---- static tiling (all Python ints) --------------------------------
        total_vregs = n_aligned // vreg_elems
        bs = max(1, min(max_block_vregs, total_vregs))     # vreg rows per block
        total_blocks = -(-total_vregs // bs)
        ncores = min(ncores_hw, total_blocks)               # 2-way only on 2-TC chips
        steps = -(-total_blocks // ncores)
        # ragged: last real block partially filled and/or a phantom block exists.
        ragged = (ncores * steps * bs) != total_vregs
        last_block = total_blocks - 1

        def _mse_partial_kernel(x_ref, t_ref, psum_ref):
            c = pl.program_id(0)
            i = pl.program_id(1)

            @pl.when(i == 0)
            def _init():
                psum_ref[...] = jnp.zeros_like(psum_ref)

            d = x_ref[...].astype(jnp.float32) - t_ref[...].astype(jnp.float32)
            sq = d * d
            if ragged:
                # Rows beyond `total_vregs` hold unspecified data (partial final
                # block / clamped phantom block) -> zero their contribution.
                valid = total_vregs - (c * steps + i) * bs
                rows = lax.broadcasted_iota(jnp.int32, sq.shape, 0)
                sq = jnp.where(rows < valid, sq, 0.0)
            psum_ref[...] += jnp.sum(sq, axis=0, keepdims=True)

        def in_map(c, i):
            # Clamp phantom block indices (only when total_blocks % ncores != 0)
            # back onto the last real block; the kernel masks them to zero.
            return (jnp.minimum(c * steps + i, last_block), 0, 0)

        blk_bytes = bs * vreg_elems * itemsize               # == bs * 4096 bytes
        buffered_bytes = 2 * 2 * blk_bytes                   # 2 inputs, double-buffered
        vmem_limit = None if buffered_bytes <= (12 << 20) else int(buffered_bytes + (8 << 20))

        cp_kwargs = dict(dimension_semantics=("parallel", "arbitrary"))
        if vmem_limit is not None:
            cp_kwargs["vmem_limit_bytes"] = vmem_limit

        cost = pl.CostEstimate(
            flops=3 * n_aligned,
            transcendentals=0,
            bytes_accessed=2 * n_aligned * itemsize + ncores * sub * _LANE * 4,
        )

        partials = pl.pallas_call(
            _mse_partial_kernel,
            out_shape=jax.ShapeDtypeStruct((ncores, sub, _LANE), jnp.float32),
            grid_spec=pltpu.PrefetchScalarGridSpec(
                num_scalar_prefetch=0,
                grid=(ncores, steps),
                in_specs=[
                    pl.BlockSpec((bs, sub, _LANE), in_map),
                    pl.BlockSpec((bs, sub, _LANE), in_map),
                ],
                out_specs=pl.BlockSpec((1, sub, _LANE), lambda c, i: (c, 0, 0)),
            ),
            compiler_params=pltpu.CompilerParams(**cp_kwargs),
            cost_estimate=cost,
        )(x3, t3)

        # Single cheap cross-lane reduce outside the kernel.
        sq_sum = jnp.sum(partials, dtype=jnp.float32)

    if rem > 0:
        # Sub-vreg tail (< sub*128 elements): negligible, plain jnp.
        xt = xw.reshape(-1)[n_aligned:].astype(jnp.float32)
        tt = tw.reshape(-1)[n_aligned:].astype(jnp.float32)
        sq_sum = sq_sum + jnp.sum((xt - tt) ** 2)

    loss = sq_sum / jnp.float32(n_total)

    # Identity pass-through (ContentLoss.forward returns its input unchanged).
    # TODO(synk): PyTorch stores the loss on `self.loss`; JAX is stateless, so it
    # is returned as a second output instead.
    return x, loss


if __name__ == "__main__":
    key = jax.random.PRNGKey(0)
    kx, kt = jax.random.split(key)

    # Small NCHW feature-map shapes consistent with a content loss.
    x = jax.random.normal(kx, (2, 4, 16, 16), dtype=jnp.float32)
    target = jax.random.normal(kt, (2, 4, 16, 16), dtype=jnp.float32)

    out, loss = content_loss_forward(x, target)
    jax.block_until_ready((out, loss))
    ref = jnp.mean((x - target) ** 2)
    assert jnp.allclose(out, x), "forward must return its input unchanged"
    assert jnp.allclose(loss, ref, rtol=1e-5, atol=1e-6), (loss, ref)

    k1, k2 = jax.random.split(kt)

    # Non-vreg-divisible size: sub-vreg tail handled in the wrapper.
    xa = jax.random.normal(k1, (3, 5, 7, 11), dtype=jnp.float32)
    ta = jax.random.normal(k2, (3, 5, 7, 11), dtype=jnp.float32)
    _, la = content_loss_forward(xa, ta)
    jax.block_until_ready(la)
    assert jnp.allclose(la, jnp.mean((xa - ta) ** 2), rtol=1e-5, atol=1e-6)

    # Multi-step accumulation per core (tiny block size forced).
    xb = jax.random.normal(k1, (4, 8, 16, 16), dtype=jnp.float32)   # 8 f32 vregs
    tb = jax.random.normal(k2, (4, 8, 16, 16), dtype=jnp.float32)
    _, lb = content_loss_forward(xb, tb, max_block_vregs=2)
    jax.block_until_ready(lb)
    assert jnp.allclose(lb, jnp.mean((xb - tb) ** 2), rtol=1e-5, atol=1e-6)

    # Ragged coverage (3 vregs, blocks of 2): in-kernel row masking, no padding.
    xr = jax.random.normal(k1, (3, 8, 128), dtype=jnp.float32)
    tr = jax.random.normal(k2, (3, 8, 128), dtype=jnp.float32)
    _, lr = content_loss_forward(xr, tr, max_block_vregs=2)
    jax.block_until_ready(lr)
    assert jnp.allclose(lr, jnp.mean((xr - tr) ** 2), rtol=1e-5, atol=1e-6)

    # Ragged + possible phantom block (5 vregs, blocks of 2 -> odd block count).
    xp = jax.random.normal(k1, (5, 8, 128), dtype=jnp.float32)
    tp = jax.random.normal(k2, (5, 8, 128), dtype=jnp.float32)
    _, lp = content_loss_forward(xp, tp, max_block_vregs=2)
    jax.block_until_ready(lp)
    assert jnp.allclose(lp, jnp.mean((xp - tp) ** 2), rtol=1e-5, atol=1e-6)

    # bf16 inputs stay bf16 in HBM with native (16,128) sublane packing.
    xc = jax.random.normal(k1, (2, 4, 16, 16), dtype=jnp.bfloat16)
    tc = jax.random.normal(k2, (2, 4, 16, 16), dtype=jnp.bfloat16)
    _, lc = content_loss_forward(xc, tc)
    jax.block_until_ready(lc)
    ref_c = jnp.mean((xc.astype(jnp.float32) - tc.astype(jnp.float32)) ** 2)
    assert jnp.allclose(lc, ref_c, rtol=1e-3, atol=1e-3)

    # Tiny input (< one vreg): pure-jnp fallback path.
    xs = jax.random.normal(k1, (5, 7), dtype=jnp.float32)
    ts = jax.random.normal(k2, (5, 7), dtype=jnp.float32)
    _, ls = content_loss_forward(xs, ts)
    jax.block_until_ready(ls)
    assert jnp.allclose(ls, jnp.mean((xs - ts) ** 2), rtol=1e-5, atol=1e-6)

    print("KERNEL_OK")
</pallas_src>

<mosaic_0001>
module attributes {stable_mosaic.version = 11 : i64} {
  func.func @_mse_partial_kernel(%arg0: i32, %arg1: i32, %arg2: memref<2x8x128xf32, #tpu.memory_space<vmem>>, %arg3: memref<2x8x128xf32, #tpu.memory_space<vmem>>, %arg4: memref<1x8x128xf32, #tpu.memory_space<vmem>>) attributes {dimension_semantics = [#tpu.dimension_semantics<parallel>, #tpu.dimension_semantics<arbitrary>], iteration_bounds = array<i64: 1, 1>, scalar_prefetch = 0 : i64, scratch_operands = 0 : i64, tpu.core_type = #tpu.core_type<tc>, window_params = [{transform_indices = @transform_0, window_bounds = array<i64: 2, 8, 128>}, {transform_indices = @transform_1, window_bounds = array<i64: 2, 8, 128>}, {transform_indices = @transform_2, window_bounds = array<i64: 1, 8, 128>}]} {
    %c0_i32 = arith.constant 0 : i32
    %0 = arith.cmpi eq, %arg1, %c0_i32 : i32
    %1 = arith.extui %0 : i1 to i32
    %c0_i32_0 = arith.constant 0 : i32
    %2 = arith.cmpi ne, %1, %c0_i32_0 : i32
    scf.if %2 {
      %cst_12 = arith.constant 0.000000e+00 : f32
      %12 = vector.broadcast %cst_12 : f32 to vector<1x8x128xf32>
      %c0_13 = arith.constant 0 : index
      %c0_14 = arith.constant 0 : index
      %c0_15 = arith.constant 0 : index
      %13 = vector.load %arg4[%c0_13, %c0_14, %c0_15] : memref<1x8x128xf32, #tpu.memory_space<vmem>>, vector<1x8x128xf32>
      tpu.vector_store %arg4[%c0_13, %c0_14, %c0_15], %12 {strides = array<i32>} : memref<1x8x128xf32, #tpu.memory_space<vmem>>, vector<1x8x128xf32>,
    } else {
    }
    %c0 = arith.constant 0 : index
    %c0_1 = arith.constant 0 : index
    %c0_2 = arith.constant 0 : index
    %3 = vector.load %arg2[%c0, %c0_1, %c0_2] : memref<2x8x128xf32, #tpu.memory_space<vmem>>, vector<2x8x128xf32>
    %c0_3 = arith.constant 0 : index
    %c0_4 = arith.constant 0 : index
    %c0_5 = arith.constant 0 : index
    %4 = vector.load %arg3[%c0_3, %c0_4, %c0_5] : memref<2x8x128xf32, #tpu.memory_space<vmem>>, vector<2x8x128xf32>
    %5 = arith.subf %3, %4 : vector<2x8x128xf32>
    %6 = arith.mulf %5, %5 : vector<2x8x128xf32>
    %c0_6 = arith.constant 0 : index
    %c0_7 = arith.constant 0 : index
    %c0_8 = arith.constant 0 : index
    %7 = vector.load %arg4[%c0_6, %c0_7, %c0_8] : memref<1x8x128xf32, #tpu.memory_space<vmem>>, vector<1x8x128xf32>
    %cst = arith.constant dense<0.000000e+00> : vector<8x128xf32>
    %8 = vector.multi_reduction <add>, %6, %cst [0] : vector<2x8x128xf32> to vector<8x128xf32>
    %9 = vector.shape_cast %8 : vector<8x128xf32> to vector<1x8x128xf32>
    %10 = arith.addf %7, %9 : vector<1x8x128xf32>
    %c0_9 = arith.constant 0 : index
    %c0_10 = arith.constant 0 : index
    %c0_11 = arith.constant 0 : index
    %11 = vector.load %arg4[%c0_9, %c0_10, %c0_11] : memref<1x8x128xf32, #tpu.memory_space<vmem>>, vector<1x8x128xf32>
    tpu.vector_store %arg4[%c0_9, %c0_10, %c0_11], %10 {strides = array<i32>} : memref<1x8x128xf32, #tpu.memory_space<vmem>>, vector<1x8x128xf32>,
    return
  }
  func.func @transform_0(%arg0: i32, %arg1: i32) -> (i32, i32, i32) {
    %c1_i32 = arith.constant 1 : i32
    %0 = arith.muli %arg0, %c1_i32 : i32
    %1 = arith.addi %0, %arg1 : i32
    %c0_i32 = arith.constant 0 : i32
    %2 = arith.minsi %1, %c0_i32 : i32
    %c0_i32_0 = arith.constant 0 : i32
    %c0_i32_1 = arith.constant 0 : i32
    %c0_i32_2 = arith.constant 0 : i32
    return %2, %c0_i32_0, %c0_i32_1 : i32, i32, i32
  }
  func.func @transform_1(%arg0: i32, %arg1: i32) -> (i32, i32, i32) {
    %c1_i32 = arith.constant 1 : i32
    %0 = arith.muli %arg0, %c1_i32 : i32
    %1 = arith.addi %0, %arg1 : i32
    %c0_i32 = arith.constant 0 : i32
    %2 = arith.minsi %1, %c0_i32 : i32
    %c0_i32_0 = arith.constant 0 : i32
    %c0_i32_1 = arith.constant 0 : i32
    %c0_i32_2 = arith.constant 0 : i32
    return %2, %c0_i32_0, %c0_i32_1 : i32, i32, i32
  }
  func.func @transform_2(%arg0: i32, %arg1: i32) -> (i32, i32, i32) {
    %c0_i32 = arith.constant 0 : i32
    %c0_i32_0 = arith.constant 0 : i32
    %c0_i32_1 = arith.constant 0 : i32
    return %arg0, %c0_i32, %c0_i32_0 : i32, i32, i32
  }
}

</mosaic_0001>

<llo_original>
// kernel: tpu_custom_call.1
$region0: #{tpu_custom_call.1}
  #allocation0 [shape = 'u32[]', space=smem, size = 0x4, offset = 0x4, fixed_abs, tag = 'smem constant byte address 0x4 - core index']
  #allocation1 [shape = 'u32[144,128]{1,0:T(1,128)}', space=vmem, size = 0x12000, scoped, tag = 'internal scratch']
  %s0 = inlined_call_operand.hbm [shape: f32[2,8,128], index: 0, kind: input, shape index: {}]
  %s1 = inlined_call_operand.hbm [shape: f32[2,8,128], index: 1, kind: input, shape index: {}]
  %s2 = inlined_call_operand.hbm [shape: f32[1,8,128], index: 2, kind: output, shape index: {}]
  %s3 = sld [smem:[#allocation0]]
  $region30: #{tpu_custom_call.1} parent=0
    _
  %s5 = ssub.s32 1, %s3
  %s6 = scalar_select 0, %s5, %s3
  $region1: #{tpu_custom_call.1} parent=0
    #allocation2 [shape = 'u8[8192]{0}', space=vmem, size = 0x2000, scoped, tag = 'input window, operand 0, single buffered']
    #allocation3 [shape = 's32[1]{0}', space=sflag, size = 0x4, scoped, tag = 'scoped memory for tpu_custom_call.1']
    #allocation4 [shape = 's32[1]{0}', space=sflag, size = 0x4, scoped, tag = 'scoped memory for tpu_custom_call.1']
    #allocation5 [shape = 'u8[8192]{0}', space=vmem, size = 0x2000, scoped, tag = 'input window, operand 1, single buffered']
    #allocation6 [shape = 's32[1]{0}', space=sflag, size = 0x4, scoped, tag = 'scoped memory for tpu_custom_call.1']
    #allocation7 [shape = 'u8[4096]{0}', space=vmem, size = 0x1000, scoped, tag = 'output window, operand 0, single buffered']
    %7 = vsyncpa [#allocation3], 0
    %8 = vsyncpa [#allocation6], 0
    %9 = vsyncpa [#allocation4], 0
    // Predicated region
    $region2: #{tpu_custom_call.1} parent=1 // pred_check
      _
    $region3: #{tpu_custom_call.1} parent=1 // pred_check_branch
      %11 = sbr.rel (0) target = $region5
    $region4: #{tpu_custom_call.1} parent=1 // pred_region
      %s12 = sadd.s32 0, 0
      %p13 = scmp.lt.s32.totalorder %s12, 0
      %s14 = scalar_select %p13, %s12, 0
      %s15 = smul.u32 2, %s14
      %s17 = ssub.s32 256, 256
      %18 = vsyncadd [#allocation3], %s17
      %s19 = smul.addr %s15, 128
      %s20 = scalar_lea.hbm %s0, %s19
      %s21 = sshll.u32 [#allocation2], 4
      %s22 = int_to_ptr.vmem [resolvable:$true] %s21
      %27 = dma.hbm_to_vmem [thread:$0]  %s20, 256, %s22, [#allocation3], 128, 128, 8
    $region5: #{tpu_custom_call.1} parent=1 // pred_fallthru
      _
    // Predicated region
    $region6: #{tpu_custom_call.1} parent=1 // pred_check
      _
    $region7: #{tpu_custom_call.1} parent=1 // pred_check_branch
      %29 = sbr.rel (0) target = $region9
    $region8: #{tpu_custom_call.1} parent=1 // pred_region
      %s30 = sadd.s32 0, 0
      %p31 = scmp.lt.s32.totalorder %s30, 0
      %s32 = scalar_select %p31, %s30, 0
      %s33 = smul.u32 2, %s32
      %s35 = ssub.s32 256, 256
      %36 = vsyncadd [#allocation6], %s35
      %s37 = smul.addr %s33, 128
      %s38 = scalar_lea.hbm %s1, %s37
      %s39 = sshll.u32 [#allocation5], 4
      %s40 = int_to_ptr.vmem [resolvable:$true] %s39
      %45 = dma.hbm_to_vmem [thread:$0]  %s38, 256, %s40, [#allocation6], 128, 128, 8
    $region9: #{tpu_custom_call.1} parent=1 // pred_fallthru
      _
    // Predicated region
    $region10: #{tpu_custom_call.1} parent=1 // pred_check
      _
    $region11: #{tpu_custom_call.1} parent=1 // pred_check_branch
      %47 = sbr.rel (0) target = $region13
    $region12: #{tpu_custom_call.1} parent=1 // pred_region
      %48 = dma.done [#allocation3], 256
    $region13: #{tpu_custom_call.1} parent=1 // pred_fallthru
      _
    // Predicated region
    $region14: #{tpu_custom_call.1} parent=1 // pred_check
      _
    $region15: #{tpu_custom_call.1} parent=1 // pred_check_branch
      %50 = sbr.rel (0) target = $region17
    $region16: #{tpu_custom_call.1} parent=1 // pred_region
      %51 = dma.done [#allocation6], 256
    $region17: #{tpu_custom_call.1} parent=1 // pred_fallthru
      _
    %s52 = sadd.s32 0, 0
    %p53 = scmp.lt.s32.totalorder %s52, 0
    %s54 = scalar_select %p53, %s52, 0
    %s55 = smul.u32 2, %s54
    %s56 = sadd.s32 0, 0
    %p57 = scmp.lt.s32.totalorder %s56, 0
    %s58 = scalar_select %p57, %s56, 0
    %s59 = smul.u32 2, %s58
    %p60 = scmp.eq.s32.totalorder 0, 0
    // Predicated region
    $region18: #{tpu_custom_call.1} parent=1 // pred_check
      %p61 = pneg %p60
    $region19: #{tpu_custom_call.1} parent=1 // pred_check_branch
      %63 = sbr.rel (%p61) target = $region21
    $region20: #{tpu_custom_call.1} parent=1 // pred_region
      %64 = vst [vmem:[#allocation7] sm:$0xff] 0.0
    $region21: #{tpu_custom_call.1} parent=1 // pred_fallthru
      _
    %v65 = vld [vmem:[#allocation2] sm:$0xff]
    %v66 = vld [vmem:[#allocation2 + $0x8] sm:$0xff]
    %v67 = vld [vmem:[#allocation5] sm:$0xff]
    %v68 = vld [vmem:[#allocation5 + $0x8] sm:$0xff]
    %v69 = vsub.f32 %v65, %v67
    %v70 = vsub.f32 %v66, %v68
    %v71 = vmul.f32 %v69, %v69
    %v72 = vmul.f32 %v70, %v70
    %v73 = vld [vmem:[#allocation7] sm:$0xff]
    %v74 = vadd.f32 %v71, %v72
    %v75 = vadd.f32 %v73, %v74
    %76 = vst [vmem:[#allocation7] sm:$0xff] %v75
    // Predicated region
    $region22: #{tpu_custom_call.1} parent=1 // pred_check
      _
    $region23: #{tpu_custom_call.1} parent=1 // pred_check_branch
      %78 = sbr.rel (0) target = $region25
    $region24: #{tpu_custom_call.1} parent=1 // pred_region
      %s80 = ssub.s32 128, 128
      %81 = vsyncadd [#allocation4], %s80
      %s83 = sshll.u32 [#allocation7], 4
      %s84 = int_to_ptr.vmem [resolvable:$true] %s83
      %86 = dma.vmem_to_hbm [thread:$0]  %s84, 128, %s2, [#allocation4]
    $region25: #{tpu_custom_call.1} parent=1 // pred_fallthru
      _
    // Predicated region
    $region26: #{tpu_custom_call.1} parent=1 // pred_check
      _
    $region27: #{tpu_custom_call.1} parent=1 // pred_check_branch
      %88 = sbr.rel (0) target = $region29
    $region28: #{tpu_custom_call.1} parent=1 // pred_region
      %89 = dma.done [#allocation4], 128
    $region29: #{tpu_custom_call.1} parent=1 // pred_fallthru
      _
    %90 = vsyncpa [#allocation3], 1
    %91 = vsyncpa [#allocation6], 1
    %92 = vsyncpa [#allocation4], 1

</llo_original>
